<compile_context>
chip_gen: v5e
topology: v5e:2x2
jax: 0.10.0
libtpu: 0.0.40
codegen_flags: <defaults>
</compile_context>

<pallas_src>
import functools

import jax
import jax.numpy as jnp
from jax import lax
from jax.experimental import pallas as pl
from jax.experimental.pallas import tpu as pltpu


def _round_up(x, m):
    return ((x + m - 1) // m) * m


def _tpu_topology():
    """Best-effort (vmem_bytes, num_tensorcores); conservative defaults."""
    vmem_bytes = 64 * 1024 * 1024      # smallest per-TC VMEM of any gen (v7x)
    num_cores = 1
    try:
        info = pltpu.get_tpu_info()
        v = getattr(info, "vmem_capacity_bytes", None)
        if v:
            vmem_bytes = int(v)
        for name in ("num_cores", "core_count", "tensorcore_count"):
            c = getattr(info, name, None)
            if c:
                num_cores = int(c)
                break
    except Exception:
        pass
    return vmem_bytes, num_cores


def _weight_rating_loss_kernel(pred_ref, targ_ref, out_ref, acc_ref, *,
                               alpha, beta, low_rating_boost,
                               high_rating_boost, inv_total, n_rows,
                               need_mask):
    c = pl.program_id(0)               # chunk (per-TensorCore) axis
    i = pl.program_id(1)               # streaming (reduction) axis

    @pl.when(i == 0)
    def _():
        acc_ref[...] = jnp.zeros_like(acc_ref)

    tile_rows, d = pred_ref.shape

    # Native-dtype HBM/VMEM tiles; upcast to f32 on-tile for accumulation.
    p = pred_ref[...].astype(jnp.float32)
    t = targ_ref[...].astype(jnp.float32)

    base_loss = jnp.abs(p - t)

    ext = t - jnp.float32(0.5)
    beta_f = float(beta)
    if beta_f == int(beta_f) and int(beta_f) >= 0:
        beta_i = int(beta_f)
        if beta_i % 2 == 0:
            # Even integer exponent (default beta=2.0): (t-0.5)^beta is already
            # non-negative, so the abs is redundant (one fewer VPU op/elem).
            rating_extremity = lax.integer_pow(ext, beta_i)
        else:
            rating_extremity = lax.integer_pow(jnp.abs(ext), beta_i)
    else:
        rating_extremity = jnp.abs(ext) ** jnp.float32(beta_f)

    # low (t < 0.3) and high (t > 0.9) masks are mutually exclusive, so the
    # nested where reproduces the in-place mask assignments exactly.
    rating_factor = jnp.where(
        t < jnp.float32(0.3),
        jnp.float32(low_rating_boost),
        jnp.where(t > jnp.float32(0.9),
                  jnp.float32(high_rating_boost),
                  jnp.float32(1.0)),
    )

    # Pre-combined multiplier applied once to base_loss.
    multiplier = (jnp.float32(1.0)
                  + jnp.float32(alpha) * rating_extremity) * rating_factor
    weighted = base_loss * multiplier

    if need_mask:
        # Ragged tail / padded chunk steps: the input index_map clamps to the
        # last valid block (data valid but possibly duplicated); masking by the
        # *unclamped* global row id makes duplicates/padding contribute zero.
        row_start = (c * pl.num_programs(1) + i) * tile_rows
        row_ids = row_start + lax.broadcasted_iota(jnp.int32, (tile_rows, 1), 0)
        weighted = jnp.where(row_ids < n_rows, weighted, jnp.float32(0.0))

    # Fold sublane groups (layout-preserving split of the sublane axis) into a
    # small (8, D) accumulator: same VALU adds per element, but tile_rows/8x
    # less accumulator VMEM traffic and a tile_rows/8x smaller epilogue sum.
    acc_ref[...] += weighted.reshape(tile_rows // 8, 8, d).sum(axis=0)

    @pl.when(i == pl.num_programs(1) - 1)
    def _():
        total = jnp.sum(acc_ref[...]) * jnp.float32(inv_total)
        # Lane-dense (1, 8, 128) output block per chunk (unmasked stores).
        out_ref[...] = jnp.full(out_ref.shape, total, dtype=jnp.float32)


def weight_rating_loss(predictions, targets, *, alpha=3.0, beta=2.0,
                       low_rating_boost=5.0, high_rating_boost=2.0,
                       tile_rows=None, input_buffers=3):
    assert predictions.shape == targets.shape
    assert predictions.ndim == 2, "expect (N, D) inputs"
    N, D = predictions.shape
    assert D % 128 == 0, "last dim must be a multiple of 128 (lane dim)"

    itemsize = jnp.dtype(predictions.dtype).itemsize
    vmem_bytes, num_tc = _tpu_topology()

    # Generation-aware tile target: bigger tiles amortize the ~0.35us/step grid
    # overhead (more important the faster HBM gets); ~6 MiB/input tile on
    # 128 MiB-VMEM parts (v5e/v6e), ~4 MiB/input tile on 64 MiB parts (v7x).
    if vmem_bytes >= 96 * 1024 * 1024:
        target_tile_bytes = 6 * 1024 * 1024
        vmem_cap = 96 * 1024 * 1024
    else:
        target_tile_bytes = 4 * 1024 * 1024
        vmem_cap = 44 * 1024 * 1024         # headroom under 64 MiB physical

    # Sub-32-bit dtypes pack along sublanes: align row tiles to the native
    # packing (8 rows f32, 16 bf16/fp16, 32 int8/fp8) so loads stay unmasked.
    min_rows = max(8, 32 // max(1, itemsize))

    if tile_rows is None:
        tr = (target_tile_bytes // (D * itemsize)) // min_rows * min_rows
        tile_rows = max(min_rows, tr)
    else:
        tile_rows = _round_up(max(int(tile_rows), min_rows), min_rows)
    # Never use a block taller than the (padded) row extent.
    tile_rows = min(tile_rows, _round_up(N, min_rows))

    # Ragged-friendly grid: cdiv + in-kernel masking instead of requiring
    # tile_rows to divide N, so awkward N never collapses tiles to 8 rows and
    # an odd step count never forces a single-chunk (single-TC) fallback.
    total_steps = pl.cdiv(N, tile_rows)
    num_chunks = max(1, min(max(2, num_tc), total_steps))
    steps_per_chunk = pl.cdiv(total_steps, num_chunks)
    last_block = total_steps - 1
    need_mask = (num_chunks * steps_per_chunk * tile_rows) != N

    if need_mask:
        def in_index_map(c, i):
            # Clamp so padded steps re-read the last valid block (their rows
            # are zeroed in-kernel) instead of issuing an out-of-bounds DMA.
            return (jnp.minimum(c * steps_per_chunk + i, last_block), 0)
    else:
        def in_index_map(c, i):
            return (c * steps_per_chunk + i, 0)

    # CORE_PARALLEL is what actually shards a grid axis across TensorCores on
    # multi-TC parts (v7x); only claim it when the chunk count matches the
    # detected core count, otherwise fall back to the harmless PARALLEL hint.
    if num_tc >= 2 and num_chunks == num_tc:
        leading_sem = pltpu.CORE_PARALLEL
    else:
        leading_sem = pltpu.PARALLEL
    dim_sem = (leading_sem, pltpu.ARBITRARY)

    kernel = functools.partial(
        _weight_rating_loss_kernel,
        alpha=float(alpha), beta=float(beta),
        low_rating_boost=float(low_rating_boost),
        high_rating_boost=float(high_rating_boost),
        inv_total=1.0 / float(N * D),
        n_rows=N, need_mask=need_mask,
    )

    # Multi-buffer the streamed inputs when chunks are long enough to benefit
    # (sweep 2 vs 3); use the default double-buffering otherwise.
    n_buf = max(2, min(int(input_buffers), int(steps_per_chunk)))
    spec_kwargs = {} if n_buf == 2 else {"pipeline_mode": pl.Buffered(n_buf)}
    in_spec = pl.BlockSpec((tile_rows, D), in_index_map, **spec_kwargs)

    in_tile_bytes = tile_rows * D * itemsize
    acc_bytes = 8 * D * 4
    out_bytes = 2 * 8 * 128 * 4
    vmem_needed = 2 * n_buf * in_tile_bytes + acc_bytes + out_bytes + (4 << 20)
    vmem_limit = int(min(vmem_cap, max(32 * 1024 * 1024, vmem_needed)))

    cost = pl.CostEstimate(
        flops=14 * N * D,
        transcendentals=(0 if float(beta) == int(float(beta)) else 2 * N * D),
        bytes_accessed=2 * N * D * itemsize + num_chunks * 8 * 128 * 4,
    )

    partials = pl.pallas_call(
        kernel,
        out_shape=jax.ShapeDtypeStruct((num_chunks, 8, 128), jnp.float32),
        grid_spec=pltpu.PrefetchScalarGridSpec(
            num_scalar_prefetch=0,
            grid=(num_chunks, steps_per_chunk),
            in_specs=[in_spec, in_spec],
            out_specs=pl.BlockSpec((1, 8, 128), lambda c, i: (c, 0, 0)),
            scratch_shapes=[pltpu.VMEM((8, D), jnp.float32)],
        ),
        compiler_params=pltpu.CompilerParams(
            dimension_semantics=dim_sem,
            vmem_limit_bytes=vmem_limit,
        ),
        cost_estimate=cost,
    )(predictions, targets)

    # Each chunk's partial already carries the 1/(N*D) mean scaling.
    return jnp.sum(partials[:, 0, 0])


def _reference(predictions, targets, alpha=3.0, beta=2.0,
               low_rating_boost=5.0, high_rating_boost=2.0):
    predictions = predictions.astype(jnp.float32)
    targets = targets.astype(jnp.float32)
    base_loss = jnp.abs(predictions - targets)
    rating_extremity = jnp.abs(targets - 0.5) ** beta
    rating_factor = jnp.where(
        targets < 0.3, low_rating_boost,
        jnp.where(targets > 0.9, high_rating_boost, 1.0))
    weighted = base_loss * (1 + alpha * rating_extremity) * rating_factor
    return jnp.mean(weighted)


if __name__ == "__main__":
    key = jax.random.PRNGKey(0)
    k1, k2, k3, k4 = jax.random.split(key, 4)

    # Case 1: f32, default params (16 "samples" x 128 ratings in [0, 1]).
    p1 = jax.random.uniform(k1, (16, 128), dtype=jnp.float32)
    t1 = jax.random.uniform(k2, (16, 128), dtype=jnp.float32)
    out1 = jax.block_until_ready(weight_rating_loss(p1, t1))
    ref1 = jax.block_until_ready(_reference(p1, t1))
    assert jnp.allclose(out1, ref1, rtol=1e-5, atol=1e-5), (out1, ref1)

    # Case 2: bf16 inputs (16-row sublane packing path).
    p2 = jax.random.uniform(k3, (16, 256), dtype=jnp.float32).astype(jnp.bfloat16)
    t2 = jax.random.uniform(k4, (16, 256), dtype=jnp.float32).astype(jnp.bfloat16)
    out2 = jax.block_until_ready(weight_rating_loss(p2, t2))
    ref2 = jax.block_until_ready(_reference(p2, t2))
    assert jnp.allclose(out2, ref2, rtol=1e-4, atol=1e-5), (out2, ref2)

    # Case 3: uneven chunk split + masked padded step (tile_rows override).
    p3 = jax.random.uniform(k1, (24, 128), dtype=jnp.float32)
    t3 = jax.random.uniform(k2, (24, 128), dtype=jnp.float32)
    out3 = jax.block_until_ready(weight_rating_loss(p3, t3, tile_rows=8))
    ref3 = jax.block_until_ready(_reference(p3, t3))
    assert jnp.allclose(out3, ref3, rtol=1e-5, atol=1e-5), (out3, ref3)

    # Case 4: odd integer beta (abs + integer_pow path).
    out4 = jax.block_until_ready(weight_rating_loss(p1, t1, beta=3.0))
    ref4 = jax.block_until_ready(_reference(p1, t1, beta=3.0))
    assert jnp.allclose(out4, ref4, rtol=1e-5, atol=1e-5), (out4, ref4)

    print("KERNEL_OK")
</pallas_src>

<mosaic_0001>
module attributes {stable_mosaic.version = 11 : i64} {
  func.func @_weight_rating_loss_kernel(%arg0: i32, %arg1: i32, %arg2: memref<16x128xf32, #tpu.memory_space<vmem>>, %arg3: memref<16x128xf32, #tpu.memory_space<vmem>>, %arg4: memref<1x8x128xf32, #tpu.memory_space<vmem>>, %arg5: memref<8x128xf32, #tpu.memory_space<vmem>>) attributes {dimension_semantics = [#tpu.dimension_semantics<parallel>, #tpu.dimension_semantics<arbitrary>], iteration_bounds = array<i64: 1, 1>, scalar_prefetch = 0 : i64, scratch_operands = 1 : i64, tpu.core_type = #tpu.core_type<tc>, window_params = [{transform_indices = @transform_0, window_bounds = array<i64: 16, 128>}, {transform_indices = @transform_1, window_bounds = array<i64: 16, 128>}, {transform_indices = @transform_2, window_bounds = array<i64: 1, 8, 128>}]} {
    %c0_i32 = arith.constant 0 : i32
    %0 = arith.cmpi eq, %arg1, %c0_i32 : i32
    %1 = arith.extui %0 : i1 to i32
    %c0_i32_0 = arith.constant 0 : i32
    %2 = arith.cmpi ne, %1, %c0_i32_0 : i32
    scf.if %2 {
      %cst_18 = arith.constant 0.000000e+00 : f32
      %33 = vector.broadcast %cst_18 : f32 to vector<8x128xf32>
      %c0_19 = arith.constant 0 : index
      %c0_20 = arith.constant 0 : index
      %34 = vector.load %arg5[%c0_19, %c0_20] : memref<8x128xf32, #tpu.memory_space<vmem>>, vector<8x128xf32>
      tpu.vector_store %arg5[%c0_19, %c0_20], %33 {strides = array<i32>} : memref<8x128xf32, #tpu.memory_space<vmem>>, vector<8x128xf32>,
    } else {
    }
    %c0 = arith.constant 0 : index
    %c0_1 = arith.constant 0 : index
    %3 = vector.load %arg2[%c0, %c0_1] : memref<16x128xf32, #tpu.memory_space<vmem>>, vector<16x128xf32>
    %c0_2 = arith.constant 0 : index
    %c0_3 = arith.constant 0 : index
    %4 = vector.load %arg3[%c0_2, %c0_3] : memref<16x128xf32, #tpu.memory_space<vmem>>, vector<16x128xf32>
    %5 = arith.subf %3, %4 : vector<16x128xf32>
    %6 = math.absf %5 : vector<16x128xf32>
    %cst = arith.constant 5.000000e-01 : f32
    %7 = vector.broadcast %cst : f32 to vector<16x128xf32>
    %8 = arith.subf %4, %7 : vector<16x128xf32>
    %9 = arith.mulf %8, %8 : vector<16x128xf32>
    %cst_4 = arith.constant 3.000000e-01 : f32
    %10 = vector.broadcast %cst_4 : f32 to vector<16x128xf32>
    %11 = arith.cmpf olt, %4, %10 : vector<16x128xf32>
    %cst_5 = arith.constant 0.899999976 : f32
    %12 = vector.broadcast %cst_5 : f32 to vector<16x128xf32>
    %13 = arith.cmpf ogt, %4, %12 : vector<16x128xf32>
    %cst_6 = arith.constant 2.000000e+00 : f32
    %cst_7 = arith.constant 1.000000e+00 : f32
    %14 = vector.broadcast %cst_6 : f32 to vector<16x128xf32>
    %15 = vector.broadcast %cst_7 : f32 to vector<16x128xf32>
    %16 = arith.select %13, %14, %15 : vector<16x128xi1>, vector<16x128xf32>
    %cst_8 = arith.constant 5.000000e+00 : f32
    %17 = vector.broadcast %cst_8 : f32 to vector<16x128xf32>
    %18 = arith.select %11, %17, %16 : vector<16x128xi1>, vector<16x128xf32>
    %cst_9 = arith.constant 3.000000e+00 : f32
    %19 = vector.broadcast %cst_9 : f32 to vector<16x128xf32>
    %20 = arith.mulf %19, %9 : vector<16x128xf32>
    %cst_10 = arith.constant 1.000000e+00 : f32
    %21 = vector.broadcast %cst_10 : f32 to vector<16x128xf32>
    %22 = arith.addf %21, %20 : vector<16x128xf32>
    %23 = arith.mulf %22, %18 : vector<16x128xf32>
    %24 = arith.mulf %6, %23 : vector<16x128xf32>
    %c0_11 = arith.constant 0 : index
    %c0_12 = arith.constant 0 : index
    %25 = vector.load %arg5[%c0_11, %c0_12] : memref<8x128xf32, #tpu.memory_space<vmem>>, vector<8x128xf32>
    %26 = vector.shape_cast %24 : vector<16x128xf32> to vector<2x8x128xf32>
    %cst_13 = arith.constant dense<0.000000e+00> : vector<8x128xf32>
    %27 = vector.multi_reduction <add>, %26, %cst_13 [0] : vector<2x8x128xf32> to vector<8x128xf32>
    %28 = arith.addf %25, %27 : vector<8x128xf32>
    %c0_14 = arith.constant 0 : index
    %c0_15 = arith.constant 0 : index
    %29 = vector.load %arg5[%c0_14, %c0_15] : memref<8x128xf32, #tpu.memory_space<vmem>>, vector<8x128xf32>
    tpu.vector_store %arg5[%c0_14, %c0_15], %28 {strides = array<i32>} : memref<8x128xf32, #tpu.memory_space<vmem>>, vector<8x128xf32>,
    %c0_i32_16 = arith.constant 0 : i32
    %30 = arith.cmpi eq, %arg1, %c0_i32_16 : i32
    %31 = arith.extui %30 : i1 to i32
    %c0_i32_17 = arith.constant 0 : i32
    %32 = arith.cmpi ne, %31, %c0_i32_17 : i32
    scf.if %32 {
      %c0_18 = arith.constant 0 : index
      %c0_19 = arith.constant 0 : index
      %33 = vector.load %arg5[%c0_18, %c0_19] : memref<8x128xf32, #tpu.memory_space<vmem>>, vector<8x128xf32>
      %34 = vector.shape_cast %33 : vector<8x128xf32> to vector<1x8x128xf32>
      %cst_20 = arith.constant dense<0.000000e+00> : vector<1xf32>
      %35 = vector.multi_reduction <add>, %34, %cst_20 [1, 2] : vector<1x8x128xf32> to vector<1xf32>
      %36 = vector.shape_cast %35 : vector<1xf32> to vector<1x1x1xf32>
      %37 = vector.extract %36[0, 0, 0] : f32 from vector<1x1x1xf32>
      %cst_21 = arith.constant 4.8828125E-4 : f32
      %38 = arith.mulf %37, %cst_21 : f32
      %39 = vector.broadcast %38 : f32 to vector<1x8x128xf32>
      %c0_22 = arith.constant 0 : index
      %c0_23 = arith.constant 0 : index
      %c0_24 = arith.constant 0 : index
      %40 = vector.load %arg4[%c0_22, %c0_23, %c0_24] : memref<1x8x128xf32, #tpu.memory_space<vmem>>, vector<1x8x128xf32>
      tpu.vector_store %arg4[%c0_22, %c0_23, %c0_24], %39 {strides = array<i32>} : memref<1x8x128xf32, #tpu.memory_space<vmem>>, vector<1x8x128xf32>,
    } else {
    }
    return
  }
  func.func @transform_0(%arg0: i32, %arg1: i32) -> (i32, i32) {
    %c1_i32 = arith.constant 1 : i32
    %0 = arith.muli %arg0, %c1_i32 : i32
    %1 = arith.addi %0, %arg1 : i32
    %c0_i32 = arith.constant 0 : i32
    %c0_i32_0 = arith.constant 0 : i32
    return %1, %c0_i32 : i32, i32
  }
  func.func @transform_1(%arg0: i32, %arg1: i32) -> (i32, i32) {
    %c1_i32 = arith.constant 1 : i32
    %0 = arith.muli %arg0, %c1_i32 : i32
    %1 = arith.addi %0, %arg1 : i32
    %c0_i32 = arith.constant 0 : i32
    %c0_i32_0 = arith.constant 0 : i32
    return %1, %c0_i32 : i32, i32
  }
  func.func @transform_2(%arg0: i32, %arg1: i32) -> (i32, i32, i32) {
    %c0_i32 = arith.constant 0 : i32
    %c0_i32_0 = arith.constant 0 : i32
    %c0_i32_1 = arith.constant 0 : i32
    return %arg0, %c0_i32, %c0_i32_0 : i32, i32, i32
  }
}

</mosaic_0001>

<llo_original>
// kernel: tpu_custom_call.1
$region0: #{tpu_custom_call.1}
  #allocation0 [shape = 'u32[]', space=smem, size = 0x4, offset = 0x4, fixed_abs, tag = 'smem constant byte address 0x4 - core index']
  #allocation1 [shape = 'u32[72,128]{1,0:T(1,128)}', space=vmem, size = 0x9000, scoped, tag = 'internal scratch']
  #allocation2 [shape = 'f32[8,128]{1,0:T(8,128)}', space=vmem, size = 0x1000, scoped, tag = 'scratch operand']
  %s0 = inlined_call_operand.hbm [shape: f32[16,128], index: 0, kind: input, shape index: {}]
  %s1 = inlined_call_operand.hbm [shape: f32[16,128], index: 1, kind: input, shape index: {}]
  %s2 = inlined_call_operand.hbm [shape: f32[1,8,128], index: 2, kind: output, shape index: {}]
  %s3 = sld [smem:[#allocation0]]
  $region34: #{tpu_custom_call.1} parent=0
    _
  %s5 = ssub.s32 1, %s3
  %s6 = scalar_select 0, %s5, %s3
  $region1: #{tpu_custom_call.1} parent=0
    #allocation3 [shape = 'u8[8192]{0}', space=vmem, size = 0x2000, scoped, tag = 'input window, operand 0, single buffered']
    #allocation4 [shape = 's32[1]{0}', space=sflag, size = 0x4, scoped, tag = 'scoped memory for tpu_custom_call.1']
    #allocation5 [shape = 's32[1]{0}', space=sflag, size = 0x4, scoped, tag = 'scoped memory for tpu_custom_call.1']
    #allocation6 [shape = 'u8[8192]{0}', space=vmem, size = 0x2000, scoped, tag = 'input window, operand 1, single buffered']
    #allocation7 [shape = 's32[1]{0}', space=sflag, size = 0x4, scoped, tag = 'scoped memory for tpu_custom_call.1']
    #allocation8 [shape = 'u8[4096]{0}', space=vmem, size = 0x1000, scoped, tag = 'output window, operand 0, single buffered']
    %7 = vsyncpa [#allocation4], 0
    %8 = vsyncpa [#allocation7], 0
    %9 = vsyncpa [#allocation5], 0
    // Predicated region
    $region2: #{tpu_custom_call.1} parent=1 // pred_check
      _
    $region3: #{tpu_custom_call.1} parent=1 // pred_check_branch
      %11 = sbr.rel (0) target = $region5
    $region4: #{tpu_custom_call.1} parent=1 // pred_region
      %s12 = sadd.s32 0, 0
      %s13 = smul.u32 2, %s12
      %15 = vsyncadd [#allocation4], 0
      %s16 = smul.addr %s13, 8
      %s17 = scalar_lea.hbm %s0, %s16
      %s18 = sshll.u32 %s17, 4
      %s19 = int_to_ptr.hbm [resolvable:$true] %s18
      %s20 = sshll.u32 [#allocation3], 4
      %s21 = int_to_ptr.vmem [resolvable:$true] %s20
      %26 = dma.hbm_to_vmem [thread:$0]  %s19, 256, %s21, [#allocation4], 128, 128, 8
    $region5: #{tpu_custom_call.1} parent=1 // pred_fallthru
      _
    // Predicated region
    $region6: #{tpu_custom_call.1} parent=1 // pred_check
      _
    $region7: #{tpu_custom_call.1} parent=1 // pred_check_branch
      %28 = sbr.rel (0) target = $region9
    $region8: #{tpu_custom_call.1} parent=1 // pred_region
      %s29 = sadd.s32 0, 0
      %s30 = smul.u32 2, %s29
      %32 = vsyncadd [#allocation7], 0
      %s33 = smul.addr %s30, 8
      %s34 = scalar_lea.hbm %s1, %s33
      %s35 = sshll.u32 %s34, 4
      %s36 = int_to_ptr.hbm [resolvable:$true] %s35
      %s37 = sshll.u32 [#allocation6], 4
      %s38 = int_to_ptr.vmem [resolvable:$true] %s37
      %43 = dma.hbm_to_vmem [thread:$0]  %s36, 256, %s38, [#allocation7], 128, 128, 8
    $region9: #{tpu_custom_call.1} parent=1 // pred_fallthru
      _
    // Predicated region
    $region10: #{tpu_custom_call.1} parent=1 // pred_check
      _
    $region11: #{tpu_custom_call.1} parent=1 // pred_check_branch
      %45 = sbr.rel (0) target = $region13
    $region12: #{tpu_custom_call.1} parent=1 // pred_region
      %47 = dma.done [#allocation4], 256
    $region13: #{tpu_custom_call.1} parent=1 // pred_fallthru
      _
    // Predicated region
    $region14: #{tpu_custom_call.1} parent=1 // pred_check
      _
    $region15: #{tpu_custom_call.1} parent=1 // pred_check_branch
      %49 = sbr.rel (0) target = $region17
    $region16: #{tpu_custom_call.1} parent=1 // pred_region
      %51 = dma.done [#allocation7], 256
    $region17: #{tpu_custom_call.1} parent=1 // pred_fallthru
      _
    %s52 = sadd.s32 0, 0
    %s53 = smul.u32 2, %s52
    %s54 = sadd.s32 0, 0
    %s55 = smul.u32 2, %s54
    %p56 = scmp.eq.s32.totalorder 0, 0
    // Predicated region
    $region18: #{tpu_custom_call.1} parent=1 // pred_check
      %p57 = pneg %p56
    $region19: #{tpu_custom_call.1} parent=1 // pred_check_branch
      %59 = sbr.rel (%p57) target = $region21
    $region20: #{tpu_custom_call.1} parent=1 // pred_region
      %60 = vst [vmem:[#allocation2] sm:$0xff] 0.0
    $region21: #{tpu_custom_call.1} parent=1 // pred_fallthru
      _
    %v61 = vld [vmem:[#allocation3] sm:$0xff]
    %v62 = vld [vmem:[#allocation3 + $0x8] sm:$0xff]
    %v63 = vld [vmem:[#allocation6] sm:$0xff]
    %v64 = vld [vmem:[#allocation6 + $0x8] sm:$0xff]
    %v65 = vsub.f32 %v61, %v63
    %v66 = vsub.f32 %v62, %v64
    %v67 = vand.u32 2147483647, %v65
    %v68 = vand.u32 2147483647, %v66
    %v69 = vsub.f32 %v63, 0.5
    %v70 = vsub.f32 %v64, 0.5
    %v71 = vmul.f32 %v69, %v69
    %v72 = vmul.f32 %v70, %v70
    %vm73 = vcmp.lt.f32.partialorder %v63, 0.3
    %vm74 = vcmp.lt.f32.partialorder %v64, 0.3
    %vm75 = vcmp.gt.f32.partialorder %v63, 0.9
    %vm76 = vcmp.gt.f32.partialorder %v64, 0.9
    %v77 = vsel %vm75, 2.0, 1.0
    %v78 = vsel %vm76, 2.0, 1.0
    %v79 = vsel %vm73, 5.0, %v77
    %v80 = vsel %vm74, 5.0, %v78
    %v81 = vmul.f32 %v71, 3.0
    %v82 = vmul.f32 %v72, 3.0
    %v83 = vadd.f32 %v81, 1.0
    %v84 = vadd.f32 %v82, 1.0
    %v85 = vmul.f32 %v83, %v79
    %v86 = vmul.f32 %v84, %v80
    %v87 = vmul.f32 %v67, %v85
    %v88 = vmul.f32 %v68, %v86
    %v89 = vld [vmem:[#allocation2] sm:$0xff]
    %v90 = vadd.f32 %v87, %v88
    %v91 = vadd.f32 %v89, %v90
    %92 = vst [vmem:[#allocation2] sm:$0xff] %v91
    // Predicated region
    $region22: #{tpu_custom_call.1} parent=1 // pred_check
      %p93 = pneg %p56
    $region23: #{tpu_custom_call.1} parent=1 // pred_check_branch
      %95 = sbr.rel (%p93) target = $region25
    $region24: #{tpu_custom_call.1} parent=1 // pred_region
      %v96 = vld [vmem:[#allocation2] sm:$0xff]
      %97 = vadd.xlane.f32.xlu0 %v96
      %v98 = vpop.xlane.xlu0 %97
      %v99 = vrot.slane %v98, 4
      %v100 = vadd.f32 %v98, %v99
      %v101 = vrot.slane %v100, 2
      %v102 = vadd.f32 %v100, %v101
      %v103 = vrot.slane %v102, 1
      %v104 = vadd.f32 %v102, %v103
      %s105 = vtos %v104
      %s106 = smul.f32 %s105, 0.00048828125
      %v107 = vstv %s106
      %108 = vst [vmem:[#allocation8] sm:$0xff] %v107
    $region25: #{tpu_custom_call.1} parent=1 // pred_fallthru
      _
    // Predicated region
    $region26: #{tpu_custom_call.1} parent=1 // pred_check
      _
    $region27: #{tpu_custom_call.1} parent=1 // pred_check_branch
      %110 = sbr.rel (0) target = $region29
    $region28: #{tpu_custom_call.1} parent=1 // pred_region
      %112 = vsyncadd [#allocation5], 0
      %s114 = sshll.u32 [#allocation8], 4
      %s115 = int_to_ptr.vmem [resolvable:$true] %s114
      %s116 = sshll.u32 %s2, 4
      %s117 = int_to_ptr.hbm [resolvable:$true] %s116
      %119 = dma.vmem_to_hbm [thread:$0]  %s115, 128, %s117, [#allocation5]
    $region29: #{tpu_custom_call.1} parent=1 // pred_fallthru
      _
    // Predicated region
    $region30: #{tpu_custom_call.1} parent=1 // pred_check
      _
    $region31: #{tpu_custom_call.1} parent=1 // pred_check_branch
      %121 = sbr.rel (0) target = $region33
    $region32: #{tpu_custom_call.1} parent=1 // pred_region
      %123 = dma.done [#allocation5], 128
    $region33: #{tpu_custom_call.1} parent=1 // pred_fallthru
      _
    %124 = vsyncpa [#allocation4], 1
    %125 = vsyncpa [#allocation7], 1
    %126 = vsyncpa [#allocation5], 1

</llo_original>
